<compile_context>
chip_gen: v7x
topology: tpu7x:2x2x1
jax: 0.10.0
libtpu: 0.0.40
codegen_flags: <defaults>
</compile_context>

<pallas_src>
import functools

import jax
import jax.numpy as jnp
from jax.experimental import pallas as pl
from jax.experimental.pallas import tpu as pltpu


# ----------------------------------------------------------------------------
# Row tiling helpers
# ----------------------------------------------------------------------------

_ROW_TILE_CANDIDATES = (2048, 1024, 512, 256, 128, 64, 32, 16, 8)
# Conservative per-call VMEM budget: leaves large headroom under v7x's 32 MiB
# scoped default (64 MiB physical) and is trivially safe on v5e/v6e (128 MiB).
_VMEM_BUDGET = 8 * 1024 * 1024


def _pick_row_tile(rows, row_bytes, fixed_bytes=0):
    """Pick the largest row tile that divides `rows` and fits the VMEM budget.

    Returns (tile, padded_rows).  If no candidate divides `rows`, the row count
    is padded up to a multiple of a moderate tile instead of returning one huge
    block (which could blow the scoped VMEM limit, especially on v7x).
    """
    budget = max(_VMEM_BUDGET - fixed_bytes, 0)
    for t in _ROW_TILE_CANDIDATES:
        if rows % t == 0 and 2 * t * row_bytes <= budget:
            return t, rows
    for t in (512, 256, 128, 64, 32, 16, 8):
        if 2 * t * row_bytes <= budget:
            return t, ((rows + t - 1) // t) * t
    return 8, ((rows + 7) // 8) * 8


def _row_tiled_call(kernel, x2d, extras, out_cols, out_dtype):
    """Run `kernel(x_block, *extra_blocks, out_block)` over row tiles of x2d.

    x2d:    (R, Cin) activation slab, tiled along the (single, parallel) grid
            axis; the output is a lane-dense (tm, out_cols) block per step.
    extras: small per-call-constant arrays (weights / bias / scales); their
            index_map is constant so they stay resident across the row loop.
    """
    rows, cin = x2d.shape
    itemsize = jnp.dtype(out_dtype).itemsize
    row_bytes = (cin + out_cols) * itemsize
    fixed_bytes = sum(2 * int(a.size) * a.dtype.itemsize for a in extras)
    tm, r_pad = _pick_row_tile(rows, row_bytes, fixed_bytes)
    if r_pad != rows:
        x2d = jnp.pad(x2d, ((0, r_pad - rows), (0, 0)))

    in_specs = [pl.BlockSpec((tm, cin), lambda i: (i, 0))]
    for a in extras:
        in_specs.append(pl.BlockSpec(a.shape, lambda i, nd=a.ndim: (0,) * nd))

    out = pl.pallas_call(
        kernel,
        out_shape=jax.ShapeDtypeStruct((r_pad, out_cols), out_dtype),
        grid=(r_pad // tm,),
        in_specs=in_specs,
        out_specs=pl.BlockSpec((tm, out_cols), lambda i: (i, 0)),
        compiler_params=pltpu.CompilerParams(
            dimension_semantics=("parallel",)),  # v7x: shard row tiles over 2 TCs
    )(x2d, *extras)
    return out[:rows] if r_pad != rows else out


# ----------------------------------------------------------------------------
# Pallas kernels
# ----------------------------------------------------------------------------

def _blockdiag_proj_kernel(x_ref, w_ref, b_ref, o_ref):
    # x_ref: (tm, Cin)  w_ref: (Cin, Cout) block-diagonal  b_ref: (1, Cout)
    acc = jnp.dot(x_ref[...], w_ref[...], preferred_element_type=jnp.float32)
    o_ref[...] = (acc + b_ref[...].astype(jnp.float32)).astype(o_ref.dtype)


def _depthwise_proj_kernel(x_ref, s_ref, b_ref, o_ref):
    # groups == Cin == Cout: per-channel scale + bias (pure VPU, lane-dense).
    y = (x_ref[...].astype(jnp.float32) * s_ref[...].astype(jnp.float32)
         + b_ref[...].astype(jnp.float32))
    o_ref[...] = y.astype(o_ref.dtype)


def _layernorm_kernel(x_ref, g_ref, b_ref, o_ref, *, eps):
    x = x_ref[...].astype(jnp.float32)
    mu = jnp.mean(x, axis=-1, keepdims=True)
    xc = x - mu
    var = jnp.mean(xc * xc, axis=-1, keepdims=True)
    inv = jax.lax.rsqrt(var + eps)
    y = xc * inv * g_ref[...].astype(jnp.float32) + b_ref[...].astype(jnp.float32)
    o_ref[...] = y.astype(o_ref.dtype)


def _sdp_kernel(x1_ref, x2_ref, x3_ref, o_ref, *, scale):
    # x1: (1, M, W)  x2: (1, K, W)  x3: (1, K, W2)  ->  o: (1, M, W2)
    q = x1_ref[0]
    k = x2_ref[0]
    v = x3_ref[0]
    # q @ k^T without materializing the transpose (contract last dims).
    s = jax.lax.dot_general(q, k, (((1,), (1,)), ((), ())),
                            preferred_element_type=jnp.float32) * scale
    s = s - jnp.max(s, axis=-1, keepdims=True)
    p = jnp.exp(s)
    p = p / jnp.sum(p, axis=-1, keepdims=True)
    o = jnp.dot(p, v.astype(jnp.float32), preferred_element_type=jnp.float32)
    o_ref[0] = o.astype(o_ref.dtype)


# ----------------------------------------------------------------------------
# Wrappers (Pallas building blocks)
# ----------------------------------------------------------------------------

def grouped_projection(x, weight, bias, groups, compute_dtype=None):
    """depthwise_projection forward: grouped 1x1 conv on (B, N, Cin) -> (B, N, Cout).

    The 1x1 conv + NCHW rearranges of the torch module are a per-position
    grouped linear map over channels, so we keep channels-last and never
    transpose the activation.  `compute_dtype=jnp.bfloat16` optionally halves
    HBM traffic for the matmul path when numerics allow (default: keep f32).
    """
    B, N, Cin = x.shape
    Cout, cin_g = weight.shape[0], weight.shape[1]
    cout_g = Cout // groups
    assert Cin == groups * cin_g and Cout == groups * cout_g

    x2 = x.reshape(B * N, Cin)                     # free reshape, no transpose
    b2 = bias.reshape(1, Cout)

    if cin_g == 1 and cout_g == 1:
        # groups == Cin == Cout (the CCSABlock case): per-channel scale + bias.
        scale = weight[:, 0, 0, 0].reshape(1, Cout)
        out = _row_tiled_call(_depthwise_proj_kernel, x2, [scale, b2], Cout, x.dtype)
    else:
        # General grouped case: pack weights into a block-diagonal (Cin, Cout)
        # matrix once and do a single dense, lane-dense matmul per row tile.
        # (MXU pads K/N to 128/256 anyway, so the off-block zeros are free for
        # the channel counts this module uses.)
        wg = jnp.transpose(weight[:, :, 0, 0].reshape(groups, cout_g, cin_g), (0, 2, 1))
        eye = jnp.eye(groups, dtype=wg.dtype)
        w_bd = jnp.einsum('gij,gh->gihj', wg, eye).reshape(Cin, Cout)
        if compute_dtype is not None:
            x2 = x2.astype(compute_dtype)
            w_bd = w_bd.astype(compute_dtype)
        out = _row_tiled_call(_blockdiag_proj_kernel, x2, [w_bd, b2], Cout, x.dtype)
    return out.reshape(B, N, Cout)


def layer_norm(x, gamma, beta, eps=1e-6):
    B, N, C = x.shape
    out = _row_tiled_call(
        functools.partial(_layernorm_kernel, eps=eps),
        x.reshape(B * N, C), [gamma.reshape(1, C), beta.reshape(1, C)], C, x.dtype)
    return out.reshape(B, N, C)


def sdp_attention(x1, x2, x3, scale):
    """ScaleDotProduct: softmax(x1 @ x2^T * scale, -1) @ x3 over (b, h) batch."""
    b, h, M, W = x1.shape
    K = x2.shape[2]
    W2 = x3.shape[3]
    BH = b * h
    x1f = x1.reshape(BH, M, W)
    x2f = x2.reshape(BH, K, W)
    x3f = x3.reshape(BH, K, W2)
    out = pl.pallas_call(
        functools.partial(_sdp_kernel, scale=scale),
        out_shape=jax.ShapeDtypeStruct((BH, M, W2), x1.dtype),
        grid=(BH,),
        in_specs=[
            pl.BlockSpec((1, M, W), lambda i: (i, 0, 0)),
            pl.BlockSpec((1, K, W), lambda i: (i, 0, 0)),
            pl.BlockSpec((1, K, W2), lambda i: (i, 0, 0)),
        ],
        out_specs=pl.BlockSpec((1, M, W2), lambda i: (i, 0, 0)),
        compiler_params=pltpu.CompilerParams(dimension_semantics=("parallel",)),
    )(x1f, x2f, x3f)
    return out.reshape(b, h, M, W2)


# ----------------------------------------------------------------------------
# Pure-JAX reference building blocks (same signatures, no Pallas)
# ----------------------------------------------------------------------------

_HI = jax.lax.Precision.HIGHEST


def ref_grouped_projection(x, weight, bias, groups, compute_dtype=None):
    B, N, Cin = x.shape
    Cout, cin_g = weight.shape[0], weight.shape[1]
    cout_g = Cout // groups
    w = weight[:, :, 0, 0].reshape(groups, cout_g, cin_g)
    xr = x.reshape(B, N, groups, cin_g)
    y = jnp.einsum('bngi,goi->bngo', xr, w, precision=_HI).reshape(B, N, Cout)
    return y + bias


def ref_layer_norm(x, gamma, beta, eps=1e-6):
    mu = jnp.mean(x, axis=-1, keepdims=True)
    var = jnp.mean((x - mu) ** 2, axis=-1, keepdims=True)
    return (x - mu) / jnp.sqrt(var + eps) * gamma + beta


def ref_sdp(x1, x2, x3, scale):
    x2t = jnp.swapaxes(x2, -2, -1)
    s = jnp.einsum('bhcw,bhwk->bhck', x1, x2t, precision=_HI) * scale
    att = jax.nn.softmax(s, axis=-1)
    return jnp.einsum('bhcw,bhwk->bhck', att, x3, precision=_HI)


# ----------------------------------------------------------------------------
# CCSABlock orchestration (shared by Pallas and reference paths)
# ----------------------------------------------------------------------------

def _apply_proj(proj_fn, x, p):
    return proj_fn(x, p['weight'], p['bias'], p['groups'])


def channel_attention_forward(q, k, v, params, n_heads, proj_fn, sdp_fn):
    q = _apply_proj(proj_fn, q, params['q_map'])
    k = _apply_proj(proj_fn, k, params['k_map'])
    v = _apply_proj(proj_fn, v, params['v_map'])
    b, hw, c_q = q.shape
    c = k.shape[2]
    scale = c ** (-0.5)
    h = n_heads
    qh = q.reshape(b, hw, h, c_q // h).transpose(0, 2, 3, 1)   # (b, h, cq/h, hw)
    kh = k.reshape(b, hw, h, c // h).transpose(0, 2, 3, 1)     # (b, h, c/h,  hw)
    vh = v.reshape(b, hw, h, c // h).transpose(0, 2, 3, 1)
    att = sdp_fn(qh, kh, vh, scale)                            # (b, h, cq/h, hw)
    att = att.transpose(0, 3, 1, 2).reshape(b, hw, c_q)
    return _apply_proj(proj_fn, att, params['proj'])


def spatial_attention_forward(q, k, v, params, n_heads, proj_fn, sdp_fn):
    q = _apply_proj(proj_fn, q, params['q_map'])
    k = _apply_proj(proj_fn, k, params['k_map'])
    v = _apply_proj(proj_fn, v, params['v_map'])
    b, hw, c = q.shape
    c_v = v.shape[2]
    h = n_heads
    scale = (c // h) ** (-0.5)
    qh = q.reshape(b, hw, h, c // h).transpose(0, 2, 1, 3)     # (b, h, hw, c/h)
    kh = k.reshape(b, hw, h, c // h).transpose(0, 2, 1, 3)
    vh = v.reshape(b, hw, h, c_v // h).transpose(0, 2, 1, 3)
    att = sdp_fn(qh, kh, vh, scale)                            # (b, h, hw, cv/h)
    att = att.transpose(0, 2, 1, 3).reshape(b, hw, c_v)
    return _apply_proj(proj_fn, att, params['proj'])


def ccsa_block_forward(xs, params, proj_fn, sdp_fn, ln_fn,
                       channel_att=True, spatial_att=True):
    xs = list(xs)
    if channel_att:
        x_c = [ln_fn(x, g, b) for x, (g, b) in zip(xs, params['channel_norm'])]
        x_cin = jnp.concatenate(x_c, axis=2)
        x_ca = [channel_attention_forward(x_c[i], x_cin, x_cin,
                                          params['c_attention'][i],
                                          params['channel_head'][i],
                                          proj_fn, sdp_fn)
                for i in range(len(xs))]
        xs = [x + a for x, a in zip(xs, x_ca)]
    if spatial_att:
        x_s = [ln_fn(x, g, b) for x, (g, b) in zip(xs, params['spatial_norm'])]
        x_sin = jnp.concatenate(x_s, axis=2)
        x_sa = [spatial_attention_forward(x_sin, x_sin, x_s[i],
                                          params['s_attention'][i],
                                          params['spatial_head'][i],
                                          proj_fn, sdp_fn)
                for i in range(len(xs))]
        xs = [x + a for x, a in zip(xs, x_sa)]
    return xs


# ----------------------------------------------------------------------------
# Parameter initialization (deterministic, torch-shaped weights)
# ----------------------------------------------------------------------------

def init_projection(key, in_features, out_features, groups):
    kw, kb = jax.random.split(key)
    w = jax.random.normal(kw, (out_features, in_features // groups, 1, 1), jnp.float32) * 0.1
    b = jax.random.normal(kb, (out_features,), jnp.float32) * 0.1
    return {'weight': w, 'bias': b, 'groups': groups}


def init_layernorm(key, dim):
    kg, kb = jax.random.split(key)
    gamma = 1.0 + 0.1 * jax.random.normal(kg, (dim,), jnp.float32)
    beta = 0.1 * jax.random.normal(kb, (dim,), jnp.float32)
    return gamma, beta


def init_channel_attention(key, in_features, out_features):
    ks = jax.random.split(key, 4)
    return {
        'q_map': init_projection(ks[0], out_features, out_features, out_features),
        'k_map': init_projection(ks[1], in_features, in_features, in_features),
        'v_map': init_projection(ks[2], in_features, in_features, in_features),
        'proj': init_projection(ks[3], out_features, out_features, out_features),
    }


def init_spatial_attention(key, in_features, out_features):
    ks = jax.random.split(key, 4)
    return {
        'q_map': init_projection(ks[0], in_features, in_features, in_features),
        'k_map': init_projection(ks[1], in_features, in_features, in_features),
        'v_map': init_projection(ks[2], out_features, out_features, out_features),
        'proj': init_projection(ks[3], out_features, out_features, out_features),
    }


def init_ccsa_block(key, features, channel_head, spatial_head):
    total = sum(features)
    n = len(features)
    keys = jax.random.split(key, 4 * n)
    return {
        'channel_head': list(channel_head),
        'spatial_head': list(spatial_head),
        'channel_norm': [init_layernorm(keys[4 * i + 0], f) for i, f in enumerate(features)],
        'spatial_norm': [init_layernorm(keys[4 * i + 1], f) for i, f in enumerate(features)],
        'c_attention': [init_channel_attention(keys[4 * i + 2], total, f)
                        for i, f in enumerate(features)],
        's_attention': [init_spatial_attention(keys[4 * i + 3], total, f)
                        for i, f in enumerate(features)],
    }


# ----------------------------------------------------------------------------
# Demo / self-check
# ----------------------------------------------------------------------------

if __name__ == "__main__":
    features = [16, 32]          # two pyramid scales
    channel_head = [1, 2]
    spatial_head = [4, 4]
    B, P = 2, 4                  # N = P*P must be a perfect square (torch module)
    N = P * P

    key = jax.random.PRNGKey(0)
    k_in, k_par, k_bd = jax.random.split(key, 3)

    keys_x = jax.random.split(k_in, len(features))
    xs = [jax.random.normal(keys_x[i], (B, N, f), jnp.float32)
          for i, f in enumerate(features)]

    params = init_ccsa_block(k_par, features, channel_head, spatial_head)

    # Pallas forward pass of CCSABlock.
    y = ccsa_block_forward(xs, params, grouped_projection, sdp_attention, layer_norm)
    y = jax.block_until_ready(y)

    # Pure-JAX reference (identical orchestration, reference building blocks).
    y_ref = ccsa_block_forward(xs, params, ref_grouped_projection, ref_sdp, ref_layer_norm)
    y_ref = jax.block_until_ready(y_ref)

    for a, b, f in zip(y, y_ref, features):
        assert a.shape == (B, N, f)
        assert jnp.allclose(a, b, atol=1e-4, rtol=1e-4), float(jnp.max(jnp.abs(a - b)))

    # Also exercise the general block-diagonal projection path (cin_g > 1),
    # which CCSABlock's depthwise (groups == channels) projections do not hit.
    gk1, gk2, gk3 = jax.random.split(k_bd, 3)
    xg = jax.random.normal(gk1, (B, N, 32), jnp.float32)
    wg = jax.random.normal(gk2, (32, 8, 1, 1), jnp.float32) * 0.1
    bg = jax.random.normal(gk3, (32,), jnp.float32) * 0.1
    yg = jax.block_until_ready(grouped_projection(xg, wg, bg, groups=4))
    yg_ref = ref_grouped_projection(xg, wg, bg, groups=4)
    assert yg.shape == (B, N, 32)
    assert jnp.allclose(yg, yg_ref, atol=1e-4, rtol=1e-4)

    print("KERNEL_OK")
</pallas_src>

<mosaic_0001>
module attributes {stable_mosaic.version = 11 : i64} {
  func.func @_layernorm_kernel(%arg0: i32, %arg1: memref<32x16xf32, #tpu.memory_space<vmem>>, %arg2: memref<1x16xf32, #tpu.memory_space<vmem>>, %arg3: memref<1x16xf32, #tpu.memory_space<vmem>>, %arg4: memref<32x16xf32, #tpu.memory_space<vmem>>) attributes {dimension_semantics = [#tpu.dimension_semantics<parallel>], iteration_bounds = array<i64: 1>, scalar_prefetch = 0 : i64, scratch_operands = 0 : i64, tpu.core_type = #tpu.core_type<tc>, window_params = [{transform_indices = @transform_0, window_bounds = array<i64: 32, 16>}, {pipeline_mode = #tpu.pipeline_mode<synchronous>, transform_indices = @transform_1, window_bounds = array<i64: 1, 16>}, {pipeline_mode = #tpu.pipeline_mode<synchronous>, transform_indices = @transform_2, window_bounds = array<i64: 1, 16>}, {transform_indices = @transform_3, window_bounds = array<i64: 32, 16>}]} {
    %c0 = arith.constant 0 : index
    %c0_0 = arith.constant 0 : index
    %0 = vector.load %arg1[%c0, %c0_0] : memref<32x16xf32, #tpu.memory_space<vmem>>, vector<32x16xf32>
    %cst = arith.constant dense<0.000000e+00> : vector<32xf32>
    %1 = vector.multi_reduction <add>, %0, %cst [1] : vector<32x16xf32> to vector<32xf32>
    %2 = vector.shape_cast %1 : vector<32xf32> to vector<32x1xf32>
    %cst_1 = arith.constant 1.600000e+01 : f32
    %3 = vector.broadcast %cst_1 : f32 to vector<32x1xf32>
    %4 = arith.divf %2, %3 : vector<32x1xf32>
    %5 = vector.broadcast %4 : vector<32x1xf32> to vector<32x16xf32>
    %6 = arith.subf %0, %5 : vector<32x16xf32>
    %7 = arith.mulf %6, %6 : vector<32x16xf32>
    %cst_2 = arith.constant dense<0.000000e+00> : vector<32xf32>
    %8 = vector.multi_reduction <add>, %7, %cst_2 [1] : vector<32x16xf32> to vector<32xf32>
    %9 = vector.shape_cast %8 : vector<32xf32> to vector<32x1xf32>
    %cst_3 = arith.constant 1.600000e+01 : f32
    %10 = vector.broadcast %cst_3 : f32 to vector<32x1xf32>
    %11 = arith.divf %9, %10 : vector<32x1xf32>
    %cst_4 = arith.constant 9.99999997E-7 : f32
    %12 = vector.broadcast %cst_4 : f32 to vector<32x1xf32>
    %13 = arith.addf %11, %12 : vector<32x1xf32>
    %14 = math.rsqrt %13 : vector<32x1xf32>
    %15 = vector.broadcast %14 : vector<32x1xf32> to vector<32x16xf32>
    %16 = arith.mulf %6, %15 : vector<32x16xf32>
    %c0_5 = arith.constant 0 : index
    %c0_6 = arith.constant 0 : index
    %17 = vector.load %arg2[%c0_5, %c0_6] : memref<1x16xf32, #tpu.memory_space<vmem>>, vector<1x16xf32>
    %18 = vector.broadcast %17 : vector<1x16xf32> to vector<32x16xf32>
    %19 = arith.mulf %16, %18 : vector<32x16xf32>
    %c0_7 = arith.constant 0 : index
    %c0_8 = arith.constant 0 : index
    %20 = vector.load %arg3[%c0_7, %c0_8] : memref<1x16xf32, #tpu.memory_space<vmem>>, vector<1x16xf32>
    %21 = vector.broadcast %20 : vector<1x16xf32> to vector<32x16xf32>
    %22 = arith.addf %19, %21 : vector<32x16xf32>
    %c0_9 = arith.constant 0 : index
    %c0_10 = arith.constant 0 : index
    %23 = vector.load %arg4[%c0_9, %c0_10] : memref<32x16xf32, #tpu.memory_space<vmem>>, vector<32x16xf32>
    tpu.vector_store %arg4[%c0_9, %c0_10], %22 {strides = array<i32>} : memref<32x16xf32, #tpu.memory_space<vmem>>, vector<32x16xf32>,
    return
  }
  func.func @transform_0(%arg0: i32) -> (i32, i32) {
    %c0_i32 = arith.constant 0 : i32
    %c0_i32_0 = arith.constant 0 : i32
    return %arg0, %c0_i32 : i32, i32
  }
  func.func @transform_1(%arg0: i32) -> (i32, i32) {
    %c0_i32 = arith.constant 0 : i32
    %c0_i32_0 = arith.constant 0 : i32
    %c0_i32_1 = arith.constant 0 : i32
    return %c0_i32, %c0_i32_0 : i32, i32
  }
  func.func @transform_2(%arg0: i32) -> (i32, i32) {
    %c0_i32 = arith.constant 0 : i32
    %c0_i32_0 = arith.constant 0 : i32
    %c0_i32_1 = arith.constant 0 : i32
    return %c0_i32, %c0_i32_0 : i32, i32
  }
  func.func @transform_3(%arg0: i32) -> (i32, i32) {
    %c0_i32 = arith.constant 0 : i32
    %c0_i32_0 = arith.constant 0 : i32
    return %arg0, %c0_i32 : i32, i32
  }
}

</mosaic_0001>

<llo_original>
// kernel: tpu_custom_call.1
$region0: #{tpu_custom_call.1}
  #allocation0 [shape = 'u32[]', space=smem, size = 0x4, offset = 0x4, fixed_abs, tag = 'smem constant byte address 0x4 - core index']
  #allocation1 [shape = 'u32[144,128]{1,0:T(1,128)}', space=vmem, size = 0x12000, scoped, tag = 'internal scratch']
  %s0 = inlined_call_operand.vmem [shape: f32[32,16], index: 0, kind: input, shape index: {}]
  %s1 = inlined_call_operand.vmem [shape: f32[1,16], index: 1, kind: input, shape index: {}]
  %s2 = inlined_call_operand.vmem [shape: f32[1,16], index: 2, kind: input, shape index: {}]
  %s3 = inlined_call_operand.vmem [shape: f32[32,16], index: 3, kind: output, shape index: {}]
  %s4 = sld [smem:[#allocation0]]
  $region22: #{tpu_custom_call.1} parent=0
    _
  %s6 = ssub.s32 1, %s4
  %s7 = scalar_select 0, %s6, %s4
  // Predicated region
  $region2: #{tpu_custom_call.1} parent=0 // pred_check
    _
  $region3: #{tpu_custom_call.1} parent=0 // pred_check_branch
    %9 = sbr.rel (0) target = $region5
  $region4: #{tpu_custom_call.1} parent=0 // pred_region
    _
  $region5: #{tpu_custom_call.1} parent=0 // pred_fallthru
    _
  // Predicated region
  $region6: #{tpu_custom_call.1} parent=0 // pred_check
    _
  $region7: #{tpu_custom_call.1} parent=0 // pred_check_branch
    %11 = sbr.rel (0) target = $region9
  $region8: #{tpu_custom_call.1} parent=0 // pred_region
    _
  $region9: #{tpu_custom_call.1} parent=0 // pred_fallthru
    _
  // Predicated region
  $region10: #{tpu_custom_call.1} parent=0 // pred_check
    _
  $region11: #{tpu_custom_call.1} parent=0 // pred_check_branch
    %13 = sbr.rel (0) target = $region13
  $region12: #{tpu_custom_call.1} parent=0 // pred_region
    _
  $region13: #{tpu_custom_call.1} parent=0 // pred_fallthru
    _
  %v14 = vld [vmem:[%s0] sm:$0xff]
  %v15 = vld [vmem:[%s0 + $0x8] sm:$0xff]
  %v16 = vld [vmem:[%s0 + $0x10] sm:$0xff]
  %v17 = vld [vmem:[%s0 + $0x18] sm:$0xff]
  %vm18 = vcmask 130048
  %v19 = vsel %vm18, %v14, 0.0
  %20 = vadd.xlane.f32.xlu0 %v19
  %v21 = vpop.xlane.xlu0 %20
  %v22 = vsel %vm18, %v15, 0.0
  %23 = vadd.xlane.f32.xlu0 %v22
  %v24 = vpop.xlane.xlu0 %23
  %v25 = vsel %vm18, %v16, 0.0
  %26 = vadd.xlane.f32.xlu0 %v25
  %v27 = vpop.xlane.xlu0 %26
  %v28 = vsel %vm18, %v17, 0.0
  %29 = vadd.xlane.f32.xlu0 %v28
  %v30 = vpop.xlane.xlu0 %29
  %v31 = vrcp.pop 16.0
  %v32 = vmul.f32 %v21, %v31
  %v33 = vmul.f32 %v24, %v31
  %v34 = vmul.f32 %v27, %v31
  %v35 = vmul.f32 %v30, %v31
  %v36 = vsub.f32 %v14, %v32
  %v37 = vsub.f32 %v15, %v33
  %v38 = vsub.f32 %v16, %v34
  %v39 = vsub.f32 %v17, %v35
  %v40 = vmul.f32 %v36, %v36
  %v41 = vmul.f32 %v37, %v37
  %v42 = vmul.f32 %v38, %v38
  %v43 = vmul.f32 %v39, %v39
  %v44 = vsel %vm18, %v40, 0.0
  %45 = vadd.xlane.f32.xlu0 %v44
  %v46 = vpop.xlane.xlu0 %45
  %v47 = vsel %vm18, %v41, 0.0
  %48 = vadd.xlane.f32.xlu0 %v47
  %v49 = vpop.xlane.xlu0 %48
  %v50 = vsel %vm18, %v42, 0.0
  %51 = vadd.xlane.f32.xlu0 %v50
  %v52 = vpop.xlane.xlu0 %51
  %v53 = vsel %vm18, %v43, 0.0
  %54 = vadd.xlane.f32.xlu0 %v53
  %v55 = vpop.xlane.xlu0 %54
  %v56 = vmul.f32 %v46, %v31
  %v57 = vmul.f32 %v49, %v31
  %v58 = vmul.f32 %v52, %v31
  %v59 = vmul.f32 %v55, %v31
  %v60 = vadd.f32 %v56, 1e-06
  %v61 = vadd.f32 %v57, 1e-06
  %v62 = vadd.f32 %v58, 1e-06
  %v63 = vadd.f32 %v59, 1e-06
  %v64 = vrsqrt.pop %v60
  %v65 = vrsqrt.pop %v61
  %v66 = vrsqrt.pop %v62
  %v67 = vrsqrt.pop %v63
  %v68 = vmul.f32 %v36, %v64
  %v69 = vmul.f32 %v37, %v65
  %v70 = vmul.f32 %v38, %v66
  %v71 = vmul.f32 %v39, %v67
  %v72 = vld [vmem:[%s1] sm:$0x1]
  %v74 = vlaneseq
  %v75 = vshrl.u32 %v74, 7
  %v76 = vsub.s32 0, %v75
  %v77 = vrot.slane %v72, %v76
  %v79 = vmul.f32 %v68, %v77
  %v80 = vmul.f32 %v69, %v77
  %v81 = vmul.f32 %v70, %v77
  %v82 = vmul.f32 %v71, %v77
  %v83 = vld [vmem:[%s2] sm:$0x1]
  %v85 = vlaneseq
  %v86 = vshrl.u32 %v85, 7
  %v87 = vsub.s32 0, %v86
  %v88 = vrot.slane %v83, %v87
  %v90 = vadd.f32 %v79, %v88
  %v91 = vadd.f32 %v80, %v88
  %v92 = vadd.f32 %v81, %v88
  %v93 = vadd.f32 %v82, %v88
  %94 = vst.msk [vmem:[%s3] sm:$0xff] %vm18, %v90
  %95 = vst.msk [vmem:[%s3 + $0x8] sm:$0xff] %vm18, %v91
  %96 = vst.msk [vmem:[%s3 + $0x10] sm:$0xff] %vm18, %v92
  %97 = vst.msk [vmem:[%s3 + $0x18] sm:$0xff] %vm18, %v93
  // Predicated region
  $region14: #{tpu_custom_call.1} parent=0 // pred_check
    _
  $region15: #{tpu_custom_call.1} parent=0 // pred_check_branch
    %99 = sbr.rel (0) target = $region17
  $region16: #{tpu_custom_call.1} parent=0 // pred_region
    _
  $region17: #{tpu_custom_call.1} parent=0 // pred_fallthru
    _
  // Predicated region
  $region18: #{tpu_custom_call.1} parent=0 // pred_check
    _
  $region19: #{tpu_custom_call.1} parent=0 // pred_check_branch
    %101 = sbr.rel (0) target = $region21
  $region20: #{tpu_custom_call.1} parent=0 // pred_region
    _
  $region21: #{tpu_custom_call.1} parent=0 // pred_fallthru
    _

</llo_original>
